<compile_context>
chip_gen: v7x
topology: tpu7x:2x2x1
jax: 0.10.0
libtpu: 0.0.40
codegen_flags: <defaults>
</compile_context>

<pallas_src>
import math
import jax
import jax.numpy as jnp
from jax.experimental import pallas as pl
from jax.experimental.pallas import tpu as pltpu

LANE = 128     # TPU lane width: feature axis padded to a multiple of this
SUBLANE = 8    # f32 sublane granularity: batch tile rounded to a multiple of this


def _cdiv(a, b):
    return -(-a // b)


def _round_up(n, m):
    return ((n + m - 1) // m) * m


def weight_initializer(key, shape):
    """Matches the PyTorch weight_initializer: trunc_normal(0, std) clipped to [-2*std, 2*std]."""
    out_features, in_features = shape
    fan_avg = 0.5 * (in_features + out_features)
    std = math.sqrt(1.0 / fan_avg / 10.0)
    w = jax.random.truncated_normal(key, -2.0, 2.0, shape, dtype=jnp.float32) * std
    return w


def residual_kernel(x_ref, w1t_ref, w2t_ref, o_ref):
    # x_ref:   (tb, Wp) f32   input tile (kept in f32 for the residual add)
    # w1t_ref: (Wp, Wp) bf16  fc1.weight.T (pre-transposed, zero-padded, resident)
    # w2t_ref: (Wp, Wp) bf16  fc2.weight.T (resident)
    x = x_ref[...]                               # f32 residual
    xb = x.astype(jnp.bfloat16)                  # bf16 operand -> native MXU path

    # fc1 + ReLU
    h = jnp.dot(xb, w1t_ref[...], preferred_element_type=jnp.float32)
    h = jnp.maximum(h, 0.0)

    # TODO(synk): dropout is None in this configuration; inference-mode dropout is identity.

    # fc2 + residual + ReLU (f32 accumulation, f32 residual add)
    out = jnp.dot(h.astype(jnp.bfloat16), w2t_ref[...],
                  preferred_element_type=jnp.float32)
    out = jnp.maximum(out + x, 0.0)

    o_ref[...] = out.astype(o_ref.dtype)


def prepare_params(w1, w2):
    """One-time weight prep (cache the result; do NOT run this per step):
    transpose to [in, out], zero-pad width to a lane-dense multiple of 128,
    cast to bf16 for the MXU. Zero padding keeps padded lanes exactly zero
    through matmul/ReLU/residual, so the final slice is exact."""
    W = w1.shape[0]
    assert w1.shape == (W, W) and w2.shape == (W, W)
    Wp = _round_up(W, LANE)

    def prep(w):
        wt = w.T.astype(jnp.bfloat16)
        if Wp == W:
            return wt
        buf = jnp.zeros((Wp, Wp), jnp.bfloat16)
        return buf.at[:W, :W].set(wt)

    return prep(w1), prep(w2), W, Wp


def residual_layer(x, w1t_p, w2t_p, W, Wp, *, tb=None):
    """x: (B, W) f32; w1t_p/w2t_p: (Wp, Wp) bf16 from prepare_params."""
    B = x.shape[0]

    # --- Balanced batch tiling ---------------------------------------------
    if tb is None:
        n_tiles = _cdiv(B, 512)                  # fill the MXU M dimension per tile
        if B >= 2 * SUBLANE:
            n_tiles = max(n_tiles, 2)            # keep both v7x TensorCores busy
        tb = _round_up(_cdiv(B, n_tiles), SUBLANE)
    else:
        tb = _round_up(tb, SUBLANE)
    n_tiles = _cdiv(B, tb)
    Bp = n_tiles * tb

    # --- Wrapper-side padding only when actually needed ---------------------
    needs_pad = (Bp != B) or (Wp != W)
    if needs_pad:
        x_p = jnp.zeros((Bp, Wp), x.dtype).at[:B, :W].set(x)
    else:
        x_p = x

    # --- VMEM budget (bytes): grant what we actually use, + headroom --------
    w_bytes = 2 * Wp * Wp * 2            # two bf16 weights, single-buffered
    x_bytes = 2 * tb * Wp * 4            # x tile, double-buffered
    o_bytes = 2 * tb * Wp * 4            # out tile, double-buffered
    scratch_bytes = 3 * tb * Wp * 4      # h (f32) + bf16 copies of x/h (compiler scratch)
    vmem_limit = int(1.25 * (w_bytes + x_bytes + o_bytes + scratch_bytes))
    vmem_limit = max(vmem_limit, 16 << 20)   # never below the tightest default
    vmem_limit = min(vmem_limit, 60 << 20)   # stay under v7x's 64 MiB physical

    grid = (Bp // tb,)
    out_p = pl.pallas_call(
        residual_kernel,
        out_shape=jax.ShapeDtypeStruct((Bp, Wp), x.dtype),
        grid_spec=pltpu.PrefetchScalarGridSpec(
            num_scalar_prefetch=0,
            grid=grid,
            in_specs=[
                # x tile: streamed, default double-buffering.
                pl.BlockSpec((tb, Wp), lambda i: (i, 0)),
                # Weights: block index never changes across the grid -> single buffer.
                pl.BlockSpec((Wp, Wp), lambda i: (0, 0), pipeline_mode=pl.Buffered(1)),
                pl.BlockSpec((Wp, Wp), lambda i: (0, 0), pipeline_mode=pl.Buffered(1)),
            ],
            out_specs=pl.BlockSpec((tb, Wp), lambda i: (i, 0)),
        ),
        compiler_params=pltpu.CompilerParams(
            # Batch tiles are independent -> shard across TCs on v7x megacore.
            dimension_semantics=("parallel",),
            vmem_limit_bytes=vmem_limit,
        ),
    )(x_p, w1t_p, w2t_p)

    if needs_pad:
        return out_p[:B, :W]
    return out_p


def residual_layer_ref(x, w1, w2):
    """Pure-JAX f32 reference matching the PyTorch forward exactly."""
    out = jnp.maximum(x @ w1.T, 0.0)
    out = out @ w2.T + x
    return jnp.maximum(out, 0.0)


if __name__ == "__main__":
    key = jax.random.PRNGKey(0)
    k_x, k_w1, k_w2 = jax.random.split(key, 3)

    B, W = 16, 32  # batch, width (small toy shape)
    x = jax.random.normal(k_x, (B, W), dtype=jnp.float32)
    w1 = weight_initializer(k_w1, (W, W))  # fc1.weight  [out, in]
    w2 = weight_initializer(k_w2, (W, W))  # fc2.weight  [out, in]

    # One-time weight prep (outside the per-step path).
    w1t_p, w2t_p, W_, Wp = prepare_params(w1, w2)

    out = residual_layer(x, w1t_p, w2t_p, W_, Wp)
    out = jax.block_until_ready(out)

    ref = residual_layer_ref(x, w1, w2)
    assert out.shape == (B, W)
    # bf16 MXU operands with f32 accumulation: compare at bf16-level tolerance.
    assert jnp.allclose(out, ref, atol=2e-2, rtol=2e-2), "mismatch vs reference"

    print("KERNEL_OK")
</pallas_src>

<mosaic_0001>
module attributes {stable_mosaic.version = 11 : i64} {
  func.func @residual_kernel(%arg0: i32, %arg1: memref<8x128xf32, #tpu.memory_space<vmem>>, %arg2: memref<128x128xbf16, #tpu.memory_space<vmem>>, %arg3: memref<128x128xbf16, #tpu.memory_space<vmem>>, %arg4: memref<8x128xf32, #tpu.memory_space<vmem>>) attributes {dimension_semantics = [#tpu.dimension_semantics<parallel>], iteration_bounds = array<i64: 2>, scalar_prefetch = 0 : i64, scratch_operands = 0 : i64, tpu.core_type = #tpu.core_type<tc>, window_params = [{transform_indices = @transform_0, window_bounds = array<i64: 8, 128>}, {pipeline_mode = #tpu.pipeline_mode<synchronous>, transform_indices = @transform_1, window_bounds = array<i64: 128, 128>}, {pipeline_mode = #tpu.pipeline_mode<synchronous>, transform_indices = @transform_2, window_bounds = array<i64: 128, 128>}, {transform_indices = @transform_3, window_bounds = array<i64: 8, 128>}]} {
    %c0 = arith.constant 0 : index
    %c0_0 = arith.constant 0 : index
    %0 = vector.load %arg1[%c0, %c0_0] : memref<8x128xf32, #tpu.memory_space<vmem>>, vector<8x128xf32>
    %1 = arith.truncf %0 : vector<8x128xf32> to vector<8x128xbf16>
    %c0_1 = arith.constant 0 : index
    %c0_2 = arith.constant 0 : index
    %2 = vector.load %arg2[%c0_1, %c0_2] : memref<128x128xbf16, #tpu.memory_space<vmem>>, vector<128x128xbf16>
    %cst = arith.constant dense<0.000000e+00> : vector<8x128xf32>
    %3 = tpu.matmul %1, %2, %cst {dimension_numbers = #tpu.dot_dimension_numbers<[1], [0], [0], [1], [0, 0, 1, 1], [], []>} : vector<8x128xbf16>, vector<128x128xbf16>, vector<8x128xf32> -> vector<8x128xf32>
    %cst_3 = arith.constant 0.000000e+00 : f32
    %4 = vector.broadcast %cst_3 : f32 to vector<8x128xf32>
    %5 = arith.maximumf %3, %4 : vector<8x128xf32>
    %6 = arith.truncf %5 : vector<8x128xf32> to vector<8x128xbf16>
    %c0_4 = arith.constant 0 : index
    %c0_5 = arith.constant 0 : index
    %7 = vector.load %arg3[%c0_4, %c0_5] : memref<128x128xbf16, #tpu.memory_space<vmem>>, vector<128x128xbf16>
    %cst_6 = arith.constant dense<0.000000e+00> : vector<8x128xf32>
    %8 = tpu.matmul %6, %7, %cst_6 {dimension_numbers = #tpu.dot_dimension_numbers<[1], [0], [0], [1], [0, 0, 1, 1], [], []>} : vector<8x128xbf16>, vector<128x128xbf16>, vector<8x128xf32> -> vector<8x128xf32>
    %9 = arith.addf %8, %0 : vector<8x128xf32>
    %cst_7 = arith.constant 0.000000e+00 : f32
    %10 = vector.broadcast %cst_7 : f32 to vector<8x128xf32>
    %11 = arith.maximumf %9, %10 : vector<8x128xf32>
    %c0_8 = arith.constant 0 : index
    %c0_9 = arith.constant 0 : index
    %12 = vector.load %arg4[%c0_8, %c0_9] : memref<8x128xf32, #tpu.memory_space<vmem>>, vector<8x128xf32>
    tpu.vector_store %arg4[%c0_8, %c0_9], %11 {strides = array<i32>} : memref<8x128xf32, #tpu.memory_space<vmem>>, vector<8x128xf32>,
    return
  }
  func.func @transform_0(%arg0: i32) -> (i32, i32) {
    %c0_i32 = arith.constant 0 : i32
    %c0_i32_0 = arith.constant 0 : i32
    return %arg0, %c0_i32 : i32, i32
  }
  func.func @transform_1(%arg0: i32) -> (i32, i32) {
    %c0_i32 = arith.constant 0 : i32
    %c0_i32_0 = arith.constant 0 : i32
    %c0_i32_1 = arith.constant 0 : i32
    return %c0_i32, %c0_i32_0 : i32, i32
  }
  func.func @transform_2(%arg0: i32) -> (i32, i32) {
    %c0_i32 = arith.constant 0 : i32
    %c0_i32_0 = arith.constant 0 : i32
    %c0_i32_1 = arith.constant 0 : i32
    return %c0_i32, %c0_i32_0 : i32, i32
  }
  func.func @transform_3(%arg0: i32) -> (i32, i32) {
    %c0_i32 = arith.constant 0 : i32
    %c0_i32_0 = arith.constant 0 : i32
    return %arg0, %c0_i32 : i32, i32
  }
}

</mosaic_0001>

<llo_original>
// kernel: tpu_custom_call.1
$region0: #{tpu_custom_call.1}
  #allocation0 [shape = 'u32[]', space=smem, size = 0x4, offset = 0x4, fixed_abs, tag = 'smem constant byte address 0x4 - core index']
  #allocation1 [shape = 'u32[144,128]{1,0:T(1,128)}', space=vmem, size = 0x12000, scoped, tag = 'internal scratch']
  %s0 = inlined_call_operand.hbm [shape: f32[16,128], index: 0, kind: input, shape index: {}]
  %s1 = inlined_call_operand.hbm [shape: bf16[128,128], index: 1, kind: input, shape index: {}]
  %s2 = inlined_call_operand.hbm [shape: bf16[128,128], index: 2, kind: input, shape index: {}]
  %s3 = inlined_call_operand.hbm [shape: f32[16,128], index: 3, kind: output, shape index: {}]
  %s4 = sld [smem:[#allocation0]]
  $region57: #{tpu_custom_call.1} parent=0
    _
  %s6 = ssub.s32 1, %s4
  %s7 = scalar_select 0, %s6, %s4
  $region1: #{tpu_custom_call.1} parent=0
    #allocation2 [shape = 'u8[8192]{0}', space=vmem, size = 0x2000, scoped, tag = 'input window, operand 0']
    #allocation3 [shape = 's32[2]{0}', space=sflag, size = 0x8, scoped, tag = 'scoped memory for tpu_custom_call.1']
    #allocation4 [shape = 's32[2]{0}', space=sflag, size = 0x8, scoped, tag = 'scoped memory for tpu_custom_call.1']
    #allocation5 [shape = 'u8[32768]{0}', space=vmem, size = 0x8000, scoped, tag = 'input window, operand 1, single buffered']
    #allocation6 [shape = 's32[1]{0}', space=sflag, size = 0x4, scoped, tag = 'scoped memory for tpu_custom_call.1']
    #allocation7 [shape = 'u8[32768]{0}', space=vmem, size = 0x8000, scoped, tag = 'input window, operand 2, single buffered']
    #allocation8 [shape = 'u8[8192]{0}', space=vmem, size = 0x2000, scoped, tag = 'output window, operand 0']
    %8 = vsyncpa [#allocation3], 0
    %s9 = scalar_lea.sflag [#allocation3], 1
    %10 = vsyncpa %s9, 0
    %11 = vsyncpa [#allocation6], 0
    %12 = vsyncpa [#allocation4], 0
    %s13 = scalar_lea.sflag [#allocation4], 1
    %14 = vsyncpa %s13, 0
    loop: start=0, step=1, limit=4
    $region2: #{tpu_custom_call.1} parent=1 // loop_pre_header
      _
    $region3: #{tpu_custom_call.1} parent=1 // loop_header
      %s16 = sphi 0, %s20
      %p17 = scmp.ge.s32.totalorder %s16, 4
      %s26 = sphi 0, %s28
      %s29 = sphi 0, %s26
      %s30 = sphi 0, %s29
      %s46 = sphi 0, %s30
      %s50 = sphi 0, %s50
      %s52 = sphi 0, %s50
      %s53 = sphi 0, %s52
      %s67 = sphi 0, %s53
      %s71 = sphi 0, %s71
      %s73 = sphi 0, %s71
      %s74 = sphi 0, %s73
      %s88 = sphi 0, %s74
      %s94 = sphi 0, %s96
      %s97 = sphi 0, %s94
      %s98 = sphi 0, %s97
      %s114 = sphi 0, %s98
    $region4: #{tpu_custom_call.1} parent=1 // loop_header_branch
      %19 = sbr.rel (%p17) target = $region8
    $region5: #{tpu_custom_call.1} parent=1 // loop_body
      %s21 = ssub.s32 %s16, 1
      %s22 = ssub.s32 %s16, 2
      %s23 = sadd.s32 %s16, 1
      %s24 = ssub.s32 %s16, %s23
      %p25 = scmp.eq.s32.totalorder %s24, 0
      %s27 = sadd.s32 %s26, 1
      %s28 = scalar_select %p25, %s26, %s27
      %p31 = pneg %p25
      %p32 = scmp.eq.s32.totalorder %s16, 1
      %p33 = por %p31, %p32
      %p34 = scmp.ne.s32.totalorder %s26, %s29
      %p35 = scmp.eq.s32.totalorder %s16, 0
      %p36 = por %p34, %p35
      %p37 = scmp.ne.s32.totalorder %s26, %s29
      %p38 = scmp.eq.s32.totalorder %s21, 1
      %p39 = por %p37, %p38
      %p40 = scmp.ne.s32.totalorder %s29, %s30
      %p41 = scmp.eq.s32.totalorder %s21, 0
      %p42 = por %p40, %p41
      %p43 = scmp.ne.s32.totalorder %s29, %s30
      %p44 = scmp.eq.s32.totalorder %s22, 1
      %p45 = por %p43, %p44
      %p47 = scmp.ne.s32.totalorder %s30, %s46
      %p48 = scmp.eq.s32.totalorder %s22, 0
      %p49 = por %p47, %p48
      %s51 = sadd.s32 %s50, 1
      %p54 = scmp.eq.s32.totalorder %s16, 1
      %p55 = scmp.ne.s32.totalorder %s50, %s52
      %p56 = scmp.eq.s32.totalorder %s16, 0
      %p57 = por %p55, %p56
      %p58 = scmp.ne.s32.totalorder %s50, %s52
      %p59 = scmp.eq.s32.totalorder %s21, 1
      %p60 = por %p58, %p59
      %p61 = scmp.ne.s32.totalorder %s52, %s53
      %p62 = scmp.eq.s32.totalorder %s21, 0
      %p63 = por %p61, %p62
      %p64 = scmp.ne.s32.totalorder %s52, %s53
      %p65 = scmp.eq.s32.totalorder %s22, 1
      %p66 = por %p64, %p65
      %p68 = scmp.ne.s32.totalorder %s53, %s67
      %p69 = scmp.eq.s32.totalorder %s22, 0
      %p70 = por %p68, %p69
      %s72 = sadd.s32 %s71, 1
      %p75 = scmp.eq.s32.totalorder %s16, 1
      %p76 = scmp.ne.s32.totalorder %s71, %s73
      %p77 = scmp.eq.s32.totalorder %s16, 0
      %p78 = por %p76, %p77
      %p79 = scmp.ne.s32.totalorder %s71, %s73
      %p80 = scmp.eq.s32.totalorder %s21, 1
      %p81 = por %p79, %p80
      %p82 = scmp.ne.s32.totalorder %s73, %s74
      %p83 = scmp.eq.s32.totalorder %s21, 0
      %p84 = por %p82, %p83
      %p85 = scmp.ne.s32.totalorder %s73, %s74
      %p86 = scmp.eq.s32.totalorder %s22, 1
      %p87 = por %p85, %p86
      %p89 = scmp.ne.s32.totalorder %s74, %s88
      %p90 = scmp.eq.s32.totalorder %s22, 0
      %p91 = por %p89, %p90
      %s92 = ssub.s32 %s16, %s23
      %p93 = scmp.eq.s32.totalorder %s92, 0
      %s95 = sadd.s32 %s94, 1
      %s96 = scalar_select %p93, %s94, %s95
      %p99 = pneg %p93
      %p100 = scmp.eq.s32.totalorder %s16, 1
      %p101 = por %p99, %p100
      %p102 = scmp.ne.s32.totalorder %s94, %s97
      %p103 = scmp.eq.s32.totalorder %s16, 0
      %p104 = por %p102, %p103
      %p105 = scmp.ne.s32.totalorder %s94, %s97
      %p106 = scmp.eq.s32.totalorder %s21, 1
      %p107 = por %p105, %p106
      %p108 = scmp.ne.s32.totalorder %s97, %s98
      %p109 = scmp.eq.s32.totalorder %s21, 0
      %p110 = por %p108, %p109
      %p111 = scmp.ne.s32.totalorder %s97, %s98
      %p112 = scmp.eq.s32.totalorder %s22, 1
      %p113 = por %p111, %p112
      %p115 = scmp.ne.s32.totalorder %s98, %s114
      %p116 = scmp.eq.s32.totalorder %s22, 0
      %p117 = por %p115, %p116
      %p118 = scmp.le.s32.totalorder 1, %s16
      %p119 = scmp.lt.s32.totalorder %s16, 3
      %p120 = pnand %p118, %p119
      %p121 = pneg %p120
      // Predicated region
      $region9: #{tpu_custom_call.1} parent=5 // pred_check
        _
      $region10: #{tpu_custom_call.1} parent=5 // pred_check_branch
        %123 = sbr.rel (%p120) target = $region12
      $region11: #{tpu_custom_call.1} parent=5 // pred_region
        %s124 = ssub.s32 %s16, 1
        // Predicated region
        $region13: #{tpu_custom_call.1} parent=11 // pred_check
          %p125 = pneg %p63
        $region14: #{tpu_custom_call.1} parent=11 // pred_check_branch
          %127 = sbr.rel (%p125) target = $region16
        $region15: #{tpu_custom_call.1} parent=11 // pred_region
          %s129 = ssub.s32 1024, 1024
          %130 = vsyncadd [#allocation6], %s129
          %s131 = sshll.u32 [#allocation5], 4
          %s132 = int_to_ptr.vmem [resolvable:$true] %s131
          %137 = dma.hbm_to_vmem [thread:$0]  %s1, 1024, %s132, [#allocation6], 64, 64, 4
        $region16: #{tpu_custom_call.1} parent=11 // pred_fallthru
          _
        // Predicated region
        $region17: #{tpu_custom_call.1} parent=11 // pred_check
          %p138 = pneg %p84
        $region18: #{tpu_custom_call.1} parent=11 // pred_check_branch
          %140 = sbr.rel (%p138) target = $region20
        $region19: #{tpu_custom_call.1} parent=11 // pred_region
          %s142 = ssub.s32 1024, 1024
          %143 = vsyncadd [#allocation6], %s142
          %s144 = sshll.u32 [#allocation7], 4
          %s145 = int_to_ptr.vmem [resolvable:$true] %s144
          %150 = dma.hbm_to_vmem [thread:$0]  %s2, 1024, %s145, [#allocation6], 64, 64, 4
        $region20: #{tpu_custom_call.1} parent=11 // pred_fallthru
          _
      $region12: #{tpu_custom_call.1} parent=5 // pred_fallthru
        _
      %p151 = scmp.lt.s32.totalorder %s16, 2
      // Predicated region
      $region21: #{tpu_custom_call.1} parent=5 // pred_check
        %p152 = pneg %p151
      $region22: #{tpu_custom_call.1} parent=5 // pred_check_branch
        %154 = sbr.rel (%p152) target = $region24
      $region23: #{tpu_custom_call.1} parent=5 // pred_region
        // Predicated region
        $region25: #{tpu_custom_call.1} parent=23 // pred_check
          %p155 = pneg %p36
        $region26: #{tpu_custom_call.1} parent=23 // pred_check_branch
          %157 = sbr.rel (%p155) target = $region28
        $region27: #{tpu_custom_call.1} parent=23 // pred_region
          %s158 = sand.u32 %s26, 1
          %s159 = scalar_lea.sflag [#allocation3], %s158
          %s160 = sand.u32 %s26, 1
          %s161 = smul.addr %s160, 8
          %s162 = scalar_lea.vmem [#allocation2], %s161
          %s164 = ssub.s32 128, 128
          %165 = vsyncadd %s159, %s164
          %s166 = smul.addr %s16, 128
          %s167 = scalar_lea.hbm %s0, %s166
          %s169 = sshll.u32 %s162, 4
          %s170 = int_to_ptr.vmem [resolvable:$true] %s169
          %172 = dma.hbm_to_vmem [thread:$0]  %s167, 128, %s170, %s159
        $region28: #{tpu_custom_call.1} parent=23 // pred_fallthru
          _
      $region24: #{tpu_custom_call.1} parent=5 // pred_fallthru
        _
      %p173 = scmp.le.s32.totalorder 1, %s16
      %p174 = scmp.lt.s32.totalorder %s16, 3
      %p175 = pnand %p173, %p174
      %p176 = pneg %p175
      // Predicated region
      $region29: #{tpu_custom_call.1} parent=5 // pred_check
        _
      $region30: #{tpu_custom_call.1} parent=5 // pred_check_branch
        %178 = sbr.rel (%p175) target = $region32
      $region31: #{tpu_custom_call.1} parent=5 // pred_region
        %s179 = ssub.s32 %s16, 1
        %s180 = sand.u32 %s29, 1
        %s181 = scalar_lea.sflag [#allocation3], %s180
        %s182 = sand.u32 %s29, 1
        %s183 = smul.addr %s182, 8
        %s184 = scalar_lea.vmem [#allocation2], %s183
        // Predicated region
        $region33: #{tpu_custom_call.1} parent=31 // pred_check
          %p185 = pneg %p42
        $region34: #{tpu_custom_call.1} parent=31 // pred_check_branch
          %187 = sbr.rel (%p185) target = $region36
        $region35: #{tpu_custom_call.1} parent=31 // pred_region
          %188 = dma.done %s181, 128
        $region36: #{tpu_custom_call.1} parent=31 // pred_fallthru
          _
        // Predicated region
        $region37: #{tpu_custom_call.1} parent=31 // pred_check
          %p189 = pneg %p63
        $region38: #{tpu_custom_call.1} parent=31 // pred_check_branch
          %191 = sbr.rel (%p189) target = $region40
        $region39: #{tpu_custom_call.1} parent=31 // pred_region
          %192 = dma.done [#allocation6], 1024
        $region40: #{tpu_custom_call.1} parent=31 // pred_fallthru
          _
        // Predicated region
        $region41: #{tpu_custom_call.1} parent=31 // pred_check
          %p193 = pneg %p84
        $region42: #{tpu_custom_call.1} parent=31 // pred_check_branch
          %195 = sbr.rel (%p193) target = $region44
        $region43: #{tpu_custom_call.1} parent=31 // pred_region
          %196 = dma.done [#allocation6], 1024
        $region44: #{tpu_custom_call.1} parent=31 // pred_fallthru
          _
        %s197 = sand.u32 %s29, 1
        %s198 = scalar_lea.sflag [#allocation3], %s197
        %s199 = sand.u32 %s29, 1
        %s200 = smul.addr %s199, 8
        %s201 = scalar_lea.vmem [#allocation2], %s200
        %p202 = pneg %p42
        %p203 = pneg %p39
        %p204 = pneg %p63
        %p205 = pneg %p60
        %p206 = pneg %p84
        %p207 = pneg %p81
        %p208 = pneg %p110
        %p209 = pneg %p107
        %s210 = sand.u32 %s97, 1
        %s211 = scalar_lea.sflag [#allocation4], %s210
        %s212 = sand.u32 %s97, 1
        %s213 = smul.addr %s212, 8
        %s214 = scalar_lea.vmem [#allocation8], %s213
        %v216 = vld [vmem:[%s184] sm:$0xff]
        %v217 = vpack.c.bf16 %v216, %v216
        %v218 = vld [vmem:[#allocation5] sm:$0xf]
        %v219 = vld [vmem:[#allocation5 + $0x4] sm:$0xf]
        %v220 = vld [vmem:[#allocation5 + $0x8] sm:$0xf]
        %v221 = vld [vmem:[#allocation5 + $0xc] sm:$0xf]
        %v222 = vld [vmem:[#allocation5 + $0x10] sm:$0xf]
        %v223 = vld [vmem:[#allocation5 + $0x14] sm:$0xf]
        %v224 = vld [vmem:[#allocation5 + $0x18] sm:$0xf]
        %v225 = vld [vmem:[#allocation5 + $0x1c] sm:$0xf]
        %v226 = vld [vmem:[#allocation5 + $0x20] sm:$0xf]
        %v227 = vld [vmem:[#allocation5 + $0x24] sm:$0xf]
        %v228 = vld [vmem:[#allocation5 + $0x28] sm:$0xf]
        %v229 = vld [vmem:[#allocation5 + $0x2c] sm:$0xf]
        %v230 = vld [vmem:[#allocation5 + $0x30] sm:$0xf]
        %v231 = vld [vmem:[#allocation5 + $0x34] sm:$0xf]
        %v232 = vld [vmem:[#allocation5 + $0x38] sm:$0xf]
        %v233 = vld [vmem:[#allocation5 + $0x3c] sm:$0xf]
        %v250 = vunpack.c.l.b16 %v218
        %v251 = vunpack.c.l.b16 %v219
        %v252 = vunpack.c.l.b16 %v220
        %v253 = vunpack.c.l.b16 %v221
        %v254 = vunpack.c.l.b16 %v222
        %v255 = vunpack.c.l.b16 %v223
        %v256 = vunpack.c.l.b16 %v224
        %v257 = vunpack.c.l.b16 %v225
        %v258 = vunpack.c.l.b16 %v226
        %v259 = vunpack.c.l.b16 %v227
        %v260 = vunpack.c.l.b16 %v228
        %v261 = vunpack.c.l.b16 %v229
        %v262 = vunpack.c.l.b16 %v230
        %v263 = vunpack.c.l.b16 %v231
        %v264 = vunpack.c.l.b16 %v232
        %v265 = vunpack.c.l.b16 %v233
        %v266 = vpack.c.b16 %v251, %v250
        %v267 = vpack.c.b16 %v253, %v252
        %v268 = vpack.c.b16 %v255, %v254
        %v269 = vpack.c.b16 %v257, %v256
        %v270 = vpack.c.b16 %v259, %v258
        %v271 = vpack.c.b16 %v261, %v260
        %v272 = vpack.c.b16 %v263, %v262
        %v273 = vpack.c.b16 %v265, %v264
        %282 = vmatprep.subr.bf16.mxu0 0
        %283 = vmatpush1.bf16.msra.mxu0 %v266
        %284 = vmatprep.subr.bf16.mxu0 0
        %285 = vmatpush1.bf16.msra.mxu0 %v267
        %286 = vmatprep.subr.bf16.mxu0 0
        %287 = vmatpush1.bf16.msra.mxu0 %v268
        %288 = vmatprep.subr.bf16.mxu0 0
        %289 = vmatpush1.bf16.msra.mxu0 %v269
        %290 = vmatprep.subr.bf16.mxu0 0
        %291 = vmatpush1.bf16.msra.mxu0 %v270
        %292 = vmatprep.subr.bf16.mxu0 0
        %293 = vmatpush1.bf16.msra.mxu0 %v271
        %294 = vmatprep.subr.bf16.mxu0 0
        %295 = vmatpush1.bf16.msra.mxu0 %v272
        %296 = vmatprep.subr.bf16.mxu0 0
        %297 = vmatpush1.bf16.msra.mxu0 %v273
        %298 = vmatprep.subr.bf16.mxu0 0
        %299 = vmatpush1.bf16.msra.mxu0 0
        %300 = vmatprep.subr.bf16.mxu0 0
        %301 = vmatpush1.bf16.msra.mxu0 0
        %302 = vmatprep.subr.bf16.mxu0 0
        %303 = vmatpush1.bf16.msra.mxu0 0
        %304 = vmatprep.subr.bf16.mxu0 0
        %305 = vmatpush1.bf16.msra.mxu0 0
        %306 = vmatprep.subr.bf16.mxu0 0
        %307 = vmatpush1.bf16.msra.mxu0 0
        %308 = vmatprep.subr.bf16.mxu0 0
        %309 = vmatpush1.bf16.msra.mxu0 0
        %310 = vmatprep.subr.bf16.mxu0 0
        %311 = vmatpush1.bf16.msra.mxu0 0
        %312 = vmatprep.subr.bf16.mxu0 0
        %313 = vmatpush1.bf16.msra.mxu0 0
        %314 = vmatprep.mubr.bf16.mxu0 0
        %315 = vmatmul.mubr.bf16.gmra.mrb[0].mxu0 %v217
        %v316 = vpop.f32.mrb[0].mxu0
        %v317 = vadd.f32 0.0, %v316
        %v318 = vpop.f32.mrb[0].mxu0
        %v319 = vpop.f32.mrb[0].mxu0
        %v320 = vpop.f32.mrb[0].mxu0
        %321 = vdwg.mxu0
        %v322 = vmax.f32 %v317, 0.0
        %v323 = vpack.c.bf16 %v322, %v322
        %v324 = vld [vmem:[#allocation7] sm:$0xf]
        %v325 = vld [vmem:[#allocation7 + $0x4] sm:$0xf]
        %v326 = vld [vmem:[#allocation7 + $0x8] sm:$0xf]
        %v327 = vld [vmem:[#allocation7 + $0xc] sm:$0xf]
        %v328 = vld [vmem:[#allocation7 + $0x10] sm:$0xf]
        %v329 = vld [vmem:[#allocation7 + $0x14] sm:$0xf]
        %v330 = vld [vmem:[#allocation7 + $0x18] sm:$0xf]
        %v331 = vld [vmem:[#allocation7 + $0x1c] sm:$0xf]
        %v332 = vld [vmem:[#allocation7 + $0x20] sm:$0xf]
        %v333 = vld [vmem:[#allocation7 + $0x24] sm:$0xf]
        %v334 = vld [vmem:[#allocation7 + $0x28] sm:$0xf]
        %v335 = vld [vmem:[#allocation7 + $0x2c] sm:$0xf]
        %v336 = vld [vmem:[#allocation7 + $0x30] sm:$0xf]
        %v337 = vld [vmem:[#allocation7 + $0x34] sm:$0xf]
        %v338 = vld [vmem:[#allocation7 + $0x38] sm:$0xf]
        %v339 = vld [vmem:[#allocation7 + $0x3c] sm:$0xf]
        %v356 = vunpack.c.l.b16 %v324
        %v357 = vunpack.c.l.b16 %v325
        %v358 = vunpack.c.l.b16 %v326
        %v359 = vunpack.c.l.b16 %v327
        %v360 = vunpack.c.l.b16 %v328
        %v361 = vunpack.c.l.b16 %v329
        %v362 = vunpack.c.l.b16 %v330
        %v363 = vunpack.c.l.b16 %v331
        %v364 = vunpack.c.l.b16 %v332
        %v365 = vunpack.c.l.b16 %v333
        %v366 = vunpack.c.l.b16 %v334
        %v367 = vunpack.c.l.b16 %v335
        %v368 = vunpack.c.l.b16 %v336
        %v369 = vunpack.c.l.b16 %v337
        %v370 = vunpack.c.l.b16 %v338
        %v371 = vunpack.c.l.b16 %v339
        %v372 = vpack.c.b16 %v357, %v356
        %v373 = vpack.c.b16 %v359, %v358
        %v374 = vpack.c.b16 %v361, %v360
        %v375 = vpack.c.b16 %v363, %v362
        %v376 = vpack.c.b16 %v365, %v364
        %v377 = vpack.c.b16 %v367, %v366
        %v378 = vpack.c.b16 %v369, %v368
        %v379 = vpack.c.b16 %v371, %v370
        %388 = vmatprep.subr.bf16.mxu0 0
        %389 = vmatpush1.bf16.msra.mxu0 %v372
        %390 = vmatprep.subr.bf16.mxu0 0
        %391 = vmatpush1.bf16.msra.mxu0 %v373
        %392 = vmatprep.subr.bf16.mxu0 0
        %393 = vmatpush1.bf16.msra.mxu0 %v374
        %394 = vmatprep.subr.bf16.mxu0 0
        %395 = vmatpush1.bf16.msra.mxu0 %v375
        %396 = vmatprep.subr.bf16.mxu0 0
        %397 = vmatpush1.bf16.msra.mxu0 %v376
        %398 = vmatprep.subr.bf16.mxu0 0
        %399 = vmatpush1.bf16.msra.mxu0 %v377
        %400 = vmatprep.subr.bf16.mxu0 0
        %401 = vmatpush1.bf16.msra.mxu0 %v378
        %402 = vmatprep.subr.bf16.mxu0 0
        %403 = vmatpush1.bf16.msra.mxu0 %v379
        %404 = vmatprep.subr.bf16.mxu0 0
        %405 = vmatpush1.bf16.msra.mxu0 0
        %406 = vmatprep.subr.bf16.mxu0 0
        %407 = vmatpush1.bf16.msra.mxu0 0
        %408 = vmatprep.subr.bf16.mxu0 0
        %409 = vmatpush1.bf16.msra.mxu0 0
        %410 = vmatprep.subr.bf16.mxu0 0
        %411 = vmatpush1.bf16.msra.mxu0 0
        %412 = vmatprep.subr.bf16.mxu0 0
        %413 = vmatpush1.bf16.msra.mxu0 0
        %414 = vmatprep.subr.bf16.mxu0 0
        %415 = vmatpush1.bf16.msra.mxu0 0
        %416 = vmatprep.subr.bf16.mxu0 0
        %417 = vmatpush1.bf16.msra.mxu0 0
        %418 = vmatprep.subr.bf16.mxu0 0
        %419 = vmatpush1.bf16.msra.mxu0 0
        %420 = vmatprep.mubr.bf16.mxu0 0
        %421 = vmatmul.mubr.bf16.gmra.mrb[0].mxu0 %v323
        %v422 = vpop.f32.mrb[0].mxu0
        %v423 = vadd.f32 %v216, %v422
        %v424 = vpop.f32.mrb[0].mxu0
        %v425 = vpop.f32.mrb[0].mxu0
        %v426 = vpop.f32.mrb[0].mxu0
        %427 = vdwg.mxu0
        %v428 = vmax.f32 %v423, 0.0
        %429 = vst [vmem:[%s214] sm:$0xff] %v428
        %s430 = sand.u32 %s97, 1
        %s431 = scalar_lea.sflag [#allocation4], %s430
        %s432 = sand.u32 %s97, 1
        %s433 = smul.addr %s432, 8
        %s434 = scalar_lea.vmem [#allocation8], %s433
        // Predicated region
        $region45: #{tpu_custom_call.1} parent=31 // pred_check
          %p435 = pneg %p107
        $region46: #{tpu_custom_call.1} parent=31 // pred_check_branch
          %437 = sbr.rel (%p435) target = $region48
        $region47: #{tpu_custom_call.1} parent=31 // pred_region
          %s439 = ssub.s32 128, 128
          %440 = vsyncadd %s431, %s439
          %s441 = smul.addr %s21, 128
          %s442 = scalar_lea.hbm %s3, %s441
          %s444 = sshll.u32 %s434, 4
          %s445 = int_to_ptr.vmem [resolvable:$true] %s444
          %447 = dma.vmem_to_hbm [thread:$0]  %s445, 128, %s442, %s431
        $region48: #{tpu_custom_call.1} parent=31 // pred_fallthru
          _
      $region32: #{tpu_custom_call.1} parent=5 // pred_fallthru
        _
      %p448 = scmp.le.s32.totalorder 2, %s16
      // Predicated region
      $region49: #{tpu_custom_call.1} parent=5 // pred_check
        %p449 = pneg %p448
      $region50: #{tpu_custom_call.1} parent=5 // pred_check_branch
        %451 = sbr.rel (%p449) target = $region52
      $region51: #{tpu_custom_call.1} parent=5 // pred_region
        %s452 = ssub.s32 %s16, 2
        // Predicated region
        $region53: #{tpu_custom_call.1} parent=51 // pred_check
          %p453 = pneg %p113
        $region54: #{tpu_custom_call.1} parent=51 // pred_check_branch
          %455 = sbr.rel (%p453) target = $region56
        $region55: #{tpu_custom_call.1} parent=51 // pred_region
          %s456 = sand.u32 %s98, 1
          %s457 = scalar_lea.sflag [#allocation4], %s456
          %s458 = sand.u32 %s98, 1
          %s459 = smul.addr %s458, 8
          %s460 = scalar_lea.vmem [#allocation8], %s459
          %461 = dma.done %s457, 128
        $region56: #{tpu_custom_call.1} parent=51 // pred_fallthru
          _
      $region52: #{tpu_custom_call.1} parent=5 // pred_fallthru
        _
    $region6: #{tpu_custom_call.1} parent=1 // loop_footer
      %s20 = sadd.s32 1, %s16
    $region7: #{tpu_custom_call.1} parent=1 // loop_footer_branch
      %15 = sbr.rel target = $region3
    $region8: #{tpu_custom_call.1} parent=1 // loop_exit
      _
    %462 = vsyncpa [#allocation3], 1
    %s463 = scalar_lea.sflag [#allocation3], 1
    %464 = vsyncpa %s463, 1
    %465 = vsyncpa [#allocation6], 1
    %466 = vsyncpa [#allocation4], 1
    %s467 = scalar_lea.sflag [#allocation4], 1
    %468 = vsyncpa %s467, 1

</llo_original>
